<compile_context>
chip_gen: v7x
topology: tpu7x:2x2x1
jax: 0.10.0
libtpu: 0.0.40
codegen_flags: <defaults>
</compile_context>

<pallas_src>
import numpy as np
import jax
import jax.numpy as jnp
from jax.experimental import pallas as pl
from jax.experimental.pallas import tpu as pltpu

EPS = 1e-5
_SQRT2_INV = float(1.0 / np.sqrt(2.0))


def up1_kernel(x1_ref, x2_ref, w1a_ref, w1b_ref, b1_ref, gamma_ref, beta_ref,
               w2_ref, b2_ref, o_ref, h_ref):
    """One grid step == one block of Ct channels.

    x1_ref: (B, Ct, D1)   x2_ref: (B, Ct, D2)   o_ref: (B, Ct, Dout)
    h_ref : (B, Ct, Dm) f32 VMEM scratch holding the Linear-1 output so the
            BatchNorm statistics (which need the full batch) can be applied in
            a second pass without re-doing the matmuls.
    """
    B = x1_ref.shape[0]
    Ct = x1_ref.shape[1]
    Dm = w1a_ref.shape[1]
    mdt = w1a_ref.dtype

    b1 = b1_ref[...]                                     # (1, Dm) f32
    inv_n = 1.0 / float(B * Dm)

    # ----- pass 1: Linear-1 (feature concat folded into two MXU matmuls, f32
    # accumulate) plus per-channel sums / sums-of-squares for BatchNorm stats.
    s1 = jnp.zeros((Ct, 1), jnp.float32)
    s2 = jnp.zeros((Ct, 1), jnp.float32)
    for b in range(B):                                   # static unroll (B known)
        h = jnp.dot(x1_ref[b].astype(mdt), w1a_ref[...],
                    preferred_element_type=jnp.float32)
        h = h + jnp.dot(x2_ref[b].astype(mdt), w1b_ref[...],
                        preferred_element_type=jnp.float32)
        h = h + b1                                       # (Ct, Dm) f32
        h_ref[b] = h
        s1 = s1 + jnp.sum(h, axis=1, keepdims=True)      # lane reduce -> (Ct, 1)
        s2 = s2 + jnp.sum(h * h, axis=1, keepdims=True)

    # ----- BatchNorm1d(enc_in): per-channel affine from training-mode batch
    # statistics over (B, Dm); variance clamped to guard f32 cancellation.
    mean = s1 * inv_n                                    # (Ct, 1)
    var = jnp.maximum(s2 * inv_n - mean * mean, 0.0)     # (Ct, 1)
    scale = gamma_ref[0] * jax.lax.rsqrt(var + EPS)      # (Ct, 1)
    shift = beta_ref[0] - mean * scale                   # (Ct, 1)

    # ----- pass 2: normalize, exact (erf) GELU, Linear-2, direct (B,Ct,Dout) store.
    w2 = w2_ref[...]
    b2 = b2_ref[...]                                     # (1, Dout) f32
    for b in range(B):
        hn = h_ref[b] * scale + shift                    # (Ct, Dm) f32
        g = 0.5 * hn * (1.0 + jax.lax.erf(hn * _SQRT2_INV))
        out = jnp.dot(g.astype(w2.dtype), w2, preferred_element_type=jnp.float32)
        o_ref[b] = (out + b2).astype(o_ref.dtype)


def _sublane_tile(*dtypes):
    """Sublane granularity the channel block must respect (8 for f32, 16 for bf16)."""
    return max(32 // jnp.dtype(d).itemsize for d in dtypes)


def _default_vmem_limit():
    """~75% of physical VMEM: ~48 MiB on v7x (64 MiB), ~96 MiB on v5e/v6e (128 MiB)."""
    try:
        phys = pltpu.get_tpu_info().vmem_capacity_bytes
    except Exception:
        phys = 64 << 20                                  # conservative (v7x) fallback
    return max(32 << 20, min(int(phys) * 3 // 4, 100 << 20))


def _choose_channel_block(C, sublane, per_channel_bytes, budget):
    """Largest Ct with (Ct == C) or (Ct % sublane == 0 and C % Ct == 0) fitting budget.

    The sublane / divisor constraints keep every (B, Ct, D) BlockSpec legal under
    Mosaic's last-two-dims tiling rule without partial blocks.
    """
    if C * per_channel_bytes <= budget:
        return C
    cands = [ct for ct in range(sublane, C, sublane)
             if C % ct == 0 and ct * per_channel_bytes <= budget]
    if cands:
        return max(cands)
    # TODO(synk): C has no sublane-aligned divisor under the budget; fall back to
    # a single full-C step (still correct; may need a higher vmem_limit_bytes).
    return C


def up1_forward(x1, x2, params, *, matmul_dtype=jnp.bfloat16, out_dtype=None):
    """Pallas forward. x1: (B, C, D1), x2: (B, C, D2) -> (B, C, Dout)."""
    B, C, D1 = x1.shape
    D2 = x2.shape[-1]
    w1, b1 = params["w1"], params["b1"]
    w2, b2 = params["w2"], params["b2"]
    gamma, beta = params["gamma"], params["beta"]
    Dm = w1.shape[-1]
    Dout = w2.shape[-1]
    out_dtype = jnp.dtype(out_dtype if out_dtype is not None else x1.dtype)

    # Weights / biases prepared once (tiny); Linear-1's weight is split so the
    # feature concat never materializes in HBM.  (Zero K-padding of W1/x to a
    # 256-multiple would be numerically exact on v6e/v7x; omitted at these sizes.)
    w1a = w1[:D1].astype(matmul_dtype)                   # (D1, Dm)
    w1b = w1[D1:].astype(matmul_dtype)                   # (D2, Dm)
    w2m = w2.astype(matmul_dtype)                        # (Dm, Dout)
    b1r = b1.reshape(1, Dm).astype(jnp.float32)
    b2r = b2.reshape(1, Dout).astype(jnp.float32)
    gam = gamma.reshape(1, C, 1).astype(jnp.float32)
    bet = beta.reshape(1, C, 1).astype(jnp.float32)

    # Per-generation VMEM budgeting and channel-block (Ct) selection.
    vmem_limit = _default_vmem_limit()
    wbytes = ((w1a.size + w1b.size + w2m.size) * jnp.dtype(matmul_dtype).itemsize
              + (b1r.size + b2r.size) * 4)
    act_budget = max(4 << 20, vmem_limit - 2 * wbytes - (8 << 20))
    per_channel_bytes = B * (Dm * 4                                   # f32 h scratch
                             + 2 * (D1 + D2) * x1.dtype.itemsize      # dbl-buf inputs
                             + 2 * Dout * out_dtype.itemsize)         # dbl-buf output
    sublane = _sublane_tile(x1.dtype, x2.dtype, out_dtype, jnp.float32)
    Ct = _choose_channel_block(C, sublane, per_channel_bytes, act_budget)
    grid_len = C // Ct
    # TODO(synk): on v7x a 1-step grid runs on a single TensorCore; splitting the
    # batch instead would break the in-kernel BatchNorm statistics, so it stays fused.

    blk = lambda i: (0, i, 0)
    zero2 = lambda i: (0, 0)
    # Constant-index_map operands: single-buffer when there is more than one step.
    const_kw = dict(pipeline_mode=pl.Buffered(1)) if grid_len > 1 else {}

    cost = pl.CostEstimate(
        flops=2 * B * C * ((D1 + D2) * Dm + Dm * Dout),
        transcendentals=B * C * Dm,
        bytes_accessed=int(x1.size * x1.dtype.itemsize
                           + x2.size * x2.dtype.itemsize
                           + wbytes + B * C * Dout * out_dtype.itemsize),
    )

    return pl.pallas_call(
        up1_kernel,
        out_shape=jax.ShapeDtypeStruct((B, C, Dout), out_dtype),
        grid=(grid_len,),
        in_specs=[
            pl.BlockSpec((B, Ct, D1), blk),              # x1 channel block
            pl.BlockSpec((B, Ct, D2), blk),              # x2 channel block
            pl.BlockSpec((D1, Dm), zero2, **const_kw),   # W1[:D1]   (VMEM-resident)
            pl.BlockSpec((D2, Dm), zero2, **const_kw),   # W1[D1:]   (VMEM-resident)
            pl.BlockSpec((1, Dm), zero2, **const_kw),    # b1
            pl.BlockSpec((1, Ct, 1), blk),               # gamma block
            pl.BlockSpec((1, Ct, 1), blk),               # beta block
            pl.BlockSpec((Dm, Dout), zero2, **const_kw), # W2        (VMEM-resident)
            pl.BlockSpec((1, Dout), zero2, **const_kw),  # b2
        ],
        out_specs=pl.BlockSpec((B, Ct, Dout), blk),      # direct (B, C, Dout) write
        scratch_shapes=[pltpu.VMEM((B, Ct, Dm), jnp.float32)],
        compiler_params=pltpu.CompilerParams(
            dimension_semantics=("parallel",),           # shard channel blocks (v7x)
            vmem_limit_bytes=int(vmem_limit),
        ),
        cost_estimate=cost,
    )(x1, x2, w1a, w1b, b1r, gam, bet, w2m, b2r)


def init_params(key, d_model, enc_in, num):
    """Deterministic synthetic init matching Up1.__init__ shapes."""
    if num == 0:
        d_in = d_model // 4 + d_model
        d_hid = d_model
        d_out = d_model
    else:
        d_in = d_model // 4 ** (num + 1) + d_model // 4 ** num
        d_hid = d_model // 4
        d_out = d_model // 4 ** num
    k1, k2, k3, k4 = jax.random.split(key, 4)
    return dict(
        w1=jax.random.normal(k1, (d_in, d_hid), jnp.float32) * 0.1,
        b1=jax.random.normal(k2, (d_hid,), jnp.float32) * 0.1,
        gamma=jnp.ones((enc_in,), jnp.float32),   # BatchNorm1d default weight
        beta=jnp.zeros((enc_in,), jnp.float32),   # BatchNorm1d default bias
        w2=jax.random.normal(k3, (d_hid, d_out), jnp.float32) * 0.1,
        b2=jax.random.normal(k4, (d_out,), jnp.float32) * 0.1,
    )


def up1_reference(x1, x2, p):
    """Pure-JAX f32 reference mirroring the PyTorch forward (training-mode BN)."""
    x = jnp.concatenate([x1, x2], axis=-1)
    h = jnp.einsum("bcd,de->bce", x, p["w1"]) + p["b1"]
    mean = jnp.mean(h, axis=(0, 2), keepdims=True)
    var = jnp.mean((h - mean) ** 2, axis=(0, 2), keepdims=True)
    hn = ((h - mean) / jnp.sqrt(var + EPS) * p["gamma"].reshape(1, -1, 1)
          + p["beta"].reshape(1, -1, 1))
    g = 0.5 * hn * (1.0 + jax.lax.erf(hn * _SQRT2_INV))
    return jnp.einsum("bce,ef->bcf", g, p["w2"]) + p["b2"]


if __name__ == "__main__":
    key = jax.random.PRNGKey(0)
    d_model, enc_in, batch, num = 32, 4, 2, 0

    kp, kx1, kx2 = jax.random.split(key, 3)
    params = init_params(kp, d_model, enc_in, num)

    # num == 0: x1 has d_model // 4 features, x2 has d_model features.
    x1 = jax.random.normal(kx1, (batch, enc_in, d_model // 4), jnp.float32)
    x2 = jax.random.normal(kx2, (batch, enc_in, d_model), jnp.float32)

    ref = up1_reference(x1, x2, params)

    # f32 matmuls + f32 output: tight tolerance vs the f32 reference.
    out_f32 = jax.block_until_ready(
        up1_forward(x1, x2, params, matmul_dtype=jnp.float32,
                    out_dtype=jnp.float32))
    assert out_f32.shape == (batch, enc_in, d_model)
    assert jnp.allclose(out_f32, ref, atol=1e-4, rtol=1e-4), "f32 path mismatch"

    # bf16 matmuls + bf16 output (MXU path, halved writeback): loose tolerance.
    out_bf16 = jax.block_until_ready(
        up1_forward(x1, x2, params, matmul_dtype=jnp.bfloat16,
                    out_dtype=jnp.bfloat16))
    assert out_bf16.shape == (batch, enc_in, d_model)
    assert out_bf16.dtype == jnp.bfloat16
    assert jnp.allclose(out_bf16.astype(jnp.float32), ref,
                        atol=5e-2, rtol=5e-2), "bf16 path mismatch"

    print("KERNEL_OK")
</pallas_src>

<mosaic_0001>
module attributes {stable_mosaic.version = 11 : i64} {
  func.func @up1_kernel(%arg0: i32, %arg1: memref<2x4x8xf32, #tpu.memory_space<vmem>>, %arg2: memref<2x4x32xf32, #tpu.memory_space<vmem>>, %arg3: memref<8x32xf32, #tpu.memory_space<vmem>>, %arg4: memref<32x32xf32, #tpu.memory_space<vmem>>, %arg5: memref<1x32xf32, #tpu.memory_space<vmem>>, %arg6: memref<1x4x1xf32, #tpu.memory_space<vmem>>, %arg7: memref<1x4x1xf32, #tpu.memory_space<vmem>>, %arg8: memref<32x32xf32, #tpu.memory_space<vmem>>, %arg9: memref<1x32xf32, #tpu.memory_space<vmem>>, %arg10: memref<2x4x32xf32, #tpu.memory_space<vmem>>, %arg11: memref<2x4x32xf32, #tpu.memory_space<vmem>>) attributes {dimension_semantics = [#tpu.dimension_semantics<parallel>], iteration_bounds = array<i64: 1>, scalar_prefetch = 0 : i64, scratch_operands = 1 : i64, tpu.core_type = #tpu.core_type<tc>, window_params = [{transform_indices = @transform_0, window_bounds = array<i64: 2, 4, 8>}, {transform_indices = @transform_1, window_bounds = array<i64: 2, 4, 32>}, {pipeline_mode = #tpu.pipeline_mode<synchronous>, transform_indices = @transform_2, window_bounds = array<i64: 8, 32>}, {pipeline_mode = #tpu.pipeline_mode<synchronous>, transform_indices = @transform_3, window_bounds = array<i64: 32, 32>}, {pipeline_mode = #tpu.pipeline_mode<synchronous>, transform_indices = @transform_4, window_bounds = array<i64: 1, 32>}, {transform_indices = @transform_5, window_bounds = array<i64: 1, 4, 1>}, {transform_indices = @transform_6, window_bounds = array<i64: 1, 4, 1>}, {pipeline_mode = #tpu.pipeline_mode<synchronous>, transform_indices = @transform_7, window_bounds = array<i64: 32, 32>}, {pipeline_mode = #tpu.pipeline_mode<synchronous>, transform_indices = @transform_8, window_bounds = array<i64: 1, 32>}, {transform_indices = @transform_9, window_bounds = array<i64: 2, 4, 32>}]} {
    %c0 = arith.constant 0 : index
    %c0_0 = arith.constant 0 : index
    %0 = vector.load %arg5[%c0, %c0_0] : memref<1x32xf32, #tpu.memory_space<vmem>>, vector<1x32xf32>
    %cst = arith.constant 0.000000e+00 : f32
    %1 = vector.broadcast %cst : f32 to vector<4x1xf32>
    %cst_1 = arith.constant 0.000000e+00 : f32
    %2 = vector.broadcast %cst_1 : f32 to vector<4x1xf32>
    %c0_2 = arith.constant 0 : index
    %c0_3 = arith.constant 0 : index
    %c0_4 = arith.constant 0 : index
    %3 = vector.load %arg1[%c0_2, %c0_3, %c0_4] : memref<2x4x8xf32, #tpu.memory_space<vmem>>, vector<1x4x8xf32>
    %4 = vector.shape_cast %3 : vector<1x4x8xf32> to vector<4x8xf32>
    %c0_5 = arith.constant 0 : index
    %c0_6 = arith.constant 0 : index
    %5 = vector.load %arg3[%c0_5, %c0_6] : memref<8x32xf32, #tpu.memory_space<vmem>>, vector<8x32xf32>
    %cst_7 = arith.constant dense<0.000000e+00> : vector<4x32xf32>
    %6 = tpu.matmul %4, %5, %cst_7 {dimension_numbers = #tpu.dot_dimension_numbers<[1], [0], [0], [1], [0, 0, 1, 1], [], []>} : vector<4x8xf32>, vector<8x32xf32>, vector<4x32xf32> -> vector<4x32xf32>
    %c0_8 = arith.constant 0 : index
    %c0_9 = arith.constant 0 : index
    %c0_10 = arith.constant 0 : index
    %7 = vector.load %arg2[%c0_8, %c0_9, %c0_10] : memref<2x4x32xf32, #tpu.memory_space<vmem>>, vector<1x4x32xf32>
    %8 = vector.shape_cast %7 : vector<1x4x32xf32> to vector<4x32xf32>
    %c0_11 = arith.constant 0 : index
    %c0_12 = arith.constant 0 : index
    %9 = vector.load %arg4[%c0_11, %c0_12] : memref<32x32xf32, #tpu.memory_space<vmem>>, vector<32x32xf32>
    %cst_13 = arith.constant dense<0.000000e+00> : vector<4x32xf32>
    %10 = tpu.matmul %8, %9, %cst_13 {dimension_numbers = #tpu.dot_dimension_numbers<[1], [0], [0], [1], [0, 0, 1, 1], [], []>} : vector<4x32xf32>, vector<32x32xf32>, vector<4x32xf32> -> vector<4x32xf32>
    %11 = arith.addf %6, %10 : vector<4x32xf32>
    %12 = vector.broadcast %0 : vector<1x32xf32> to vector<4x32xf32>
    %13 = arith.addf %11, %12 : vector<4x32xf32>
    %c0_14 = arith.constant 0 : index
    %c0_15 = arith.constant 0 : index
    %c0_16 = arith.constant 0 : index
    %14 = vector.load %arg11[%c0_14, %c0_15, %c0_16] : memref<2x4x32xf32, #tpu.memory_space<vmem>>, vector<1x4x32xf32>
    %15 = vector.shape_cast %14 : vector<1x4x32xf32> to vector<4x32xf32>
    %16 = vector.shape_cast %13 : vector<4x32xf32> to vector<1x4x32xf32>
    tpu.vector_store %arg11[%c0_14, %c0_15, %c0_16], %16 {strides = array<i32>} : memref<2x4x32xf32, #tpu.memory_space<vmem>>, vector<1x4x32xf32>,
    %cst_17 = arith.constant dense<0.000000e+00> : vector<4xf32>
    %17 = vector.multi_reduction <add>, %13, %cst_17 [1] : vector<4x32xf32> to vector<4xf32>
    %18 = vector.shape_cast %17 : vector<4xf32> to vector<4x1xf32>
    %19 = arith.addf %1, %18 : vector<4x1xf32>
    %20 = arith.mulf %13, %13 : vector<4x32xf32>
    %cst_18 = arith.constant dense<0.000000e+00> : vector<4xf32>
    %21 = vector.multi_reduction <add>, %20, %cst_18 [1] : vector<4x32xf32> to vector<4xf32>
    %22 = vector.shape_cast %21 : vector<4xf32> to vector<4x1xf32>
    %23 = arith.addf %2, %22 : vector<4x1xf32>
    %c1 = arith.constant 1 : index
    %c0_19 = arith.constant 0 : index
    %c0_20 = arith.constant 0 : index
    %24 = vector.load %arg1[%c1, %c0_19, %c0_20] : memref<2x4x8xf32, #tpu.memory_space<vmem>>, vector<1x4x8xf32>
    %25 = vector.shape_cast %24 : vector<1x4x8xf32> to vector<4x8xf32>
    %c0_21 = arith.constant 0 : index
    %c0_22 = arith.constant 0 : index
    %26 = vector.load %arg3[%c0_21, %c0_22] : memref<8x32xf32, #tpu.memory_space<vmem>>, vector<8x32xf32>
    %cst_23 = arith.constant dense<0.000000e+00> : vector<4x32xf32>
    %27 = tpu.matmul %25, %26, %cst_23 {dimension_numbers = #tpu.dot_dimension_numbers<[1], [0], [0], [1], [0, 0, 1, 1], [], []>} : vector<4x8xf32>, vector<8x32xf32>, vector<4x32xf32> -> vector<4x32xf32>
    %c1_24 = arith.constant 1 : index
    %c0_25 = arith.constant 0 : index
    %c0_26 = arith.constant 0 : index
    %28 = vector.load %arg2[%c1_24, %c0_25, %c0_26] : memref<2x4x32xf32, #tpu.memory_space<vmem>>, vector<1x4x32xf32>
    %29 = vector.shape_cast %28 : vector<1x4x32xf32> to vector<4x32xf32>
    %c0_27 = arith.constant 0 : index
    %c0_28 = arith.constant 0 : index
    %30 = vector.load %arg4[%c0_27, %c0_28] : memref<32x32xf32, #tpu.memory_space<vmem>>, vector<32x32xf32>
    %cst_29 = arith.constant dense<0.000000e+00> : vector<4x32xf32>
    %31 = tpu.matmul %29, %30, %cst_29 {dimension_numbers = #tpu.dot_dimension_numbers<[1], [0], [0], [1], [0, 0, 1, 1], [], []>} : vector<4x32xf32>, vector<32x32xf32>, vector<4x32xf32> -> vector<4x32xf32>
    %32 = arith.addf %27, %31 : vector<4x32xf32>
    %33 = vector.broadcast %0 : vector<1x32xf32> to vector<4x32xf32>
    %34 = arith.addf %32, %33 : vector<4x32xf32>
    %c1_30 = arith.constant 1 : index
    %c0_31 = arith.constant 0 : index
    %c0_32 = arith.constant 0 : index
    %35 = vector.load %arg11[%c1_30, %c0_31, %c0_32] : memref<2x4x32xf32, #tpu.memory_space<vmem>>, vector<1x4x32xf32>
    %36 = vector.shape_cast %35 : vector<1x4x32xf32> to vector<4x32xf32>
    %37 = vector.shape_cast %34 : vector<4x32xf32> to vector<1x4x32xf32>
    tpu.vector_store %arg11[%c1_30, %c0_31, %c0_32], %37 {strides = array<i32>} : memref<2x4x32xf32, #tpu.memory_space<vmem>>, vector<1x4x32xf32>,
    %cst_33 = arith.constant dense<0.000000e+00> : vector<4xf32>
    %38 = vector.multi_reduction <add>, %34, %cst_33 [1] : vector<4x32xf32> to vector<4xf32>
    %39 = vector.shape_cast %38 : vector<4xf32> to vector<4x1xf32>
    %40 = arith.addf %19, %39 : vector<4x1xf32>
    %41 = arith.mulf %34, %34 : vector<4x32xf32>
    %cst_34 = arith.constant dense<0.000000e+00> : vector<4xf32>
    %42 = vector.multi_reduction <add>, %41, %cst_34 [1] : vector<4x32xf32> to vector<4xf32>
    %43 = vector.shape_cast %42 : vector<4xf32> to vector<4x1xf32>
    %44 = arith.addf %23, %43 : vector<4x1xf32>
    %cst_35 = arith.constant 1.562500e-02 : f32
    %45 = vector.broadcast %cst_35 : f32 to vector<4x1xf32>
    %46 = arith.mulf %40, %45 : vector<4x1xf32>
    %cst_36 = arith.constant 1.562500e-02 : f32
    %47 = vector.broadcast %cst_36 : f32 to vector<4x1xf32>
    %48 = arith.mulf %44, %47 : vector<4x1xf32>
    %49 = arith.mulf %46, %46 : vector<4x1xf32>
    %50 = arith.subf %48, %49 : vector<4x1xf32>
    %cst_37 = arith.constant 0.000000e+00 : f32
    %51 = vector.broadcast %cst_37 : f32 to vector<4x1xf32>
    %52 = arith.maximumf %50, %51 : vector<4x1xf32>
    %c0_38 = arith.constant 0 : index
    %c0_39 = arith.constant 0 : index
    %c0_40 = arith.constant 0 : index
    %53 = vector.load %arg6[%c0_38, %c0_39, %c0_40] : memref<1x4x1xf32, #tpu.memory_space<vmem>>, vector<1x4x1xf32>
    %54 = vector.shape_cast %53 : vector<1x4x1xf32> to vector<4x1xf32>
    %cst_41 = arith.constant 9.99999974E-6 : f32
    %55 = vector.broadcast %cst_41 : f32 to vector<4x1xf32>
    %56 = arith.addf %52, %55 : vector<4x1xf32>
    %57 = math.rsqrt %56 : vector<4x1xf32>
    %58 = arith.mulf %54, %57 : vector<4x1xf32>
    %c0_42 = arith.constant 0 : index
    %c0_43 = arith.constant 0 : index
    %c0_44 = arith.constant 0 : index
    %59 = vector.load %arg7[%c0_42, %c0_43, %c0_44] : memref<1x4x1xf32, #tpu.memory_space<vmem>>, vector<1x4x1xf32>
    %60 = vector.shape_cast %59 : vector<1x4x1xf32> to vector<4x1xf32>
    %61 = arith.mulf %46, %58 : vector<4x1xf32>
    %62 = arith.subf %60, %61 : vector<4x1xf32>
    %c0_45 = arith.constant 0 : index
    %c0_46 = arith.constant 0 : index
    %63 = vector.load %arg8[%c0_45, %c0_46] : memref<32x32xf32, #tpu.memory_space<vmem>>, vector<32x32xf32>
    %c0_47 = arith.constant 0 : index
    %c0_48 = arith.constant 0 : index
    %64 = vector.load %arg9[%c0_47, %c0_48] : memref<1x32xf32, #tpu.memory_space<vmem>>, vector<1x32xf32>
    %c0_49 = arith.constant 0 : index
    %c0_50 = arith.constant 0 : index
    %c0_51 = arith.constant 0 : index
    %65 = vector.load %arg11[%c0_49, %c0_50, %c0_51] : memref<2x4x32xf32, #tpu.memory_space<vmem>>, vector<1x4x32xf32>
    %66 = vector.shape_cast %65 : vector<1x4x32xf32> to vector<4x32xf32>
    %67 = vector.broadcast %58 : vector<4x1xf32> to vector<4x32xf32>
    %68 = arith.mulf %66, %67 : vector<4x32xf32>
    %69 = vector.broadcast %62 : vector<4x1xf32> to vector<4x32xf32>
    %70 = arith.addf %68, %69 : vector<4x32xf32>
    %cst_52 = arith.constant 5.000000e-01 : f32
    %71 = vector.broadcast %cst_52 : f32 to vector<4x32xf32>
    %72 = arith.mulf %71, %70 : vector<4x32xf32>
    %cst_53 = arith.constant 0.707106769 : f32
    %73 = vector.broadcast %cst_53 : f32 to vector<4x32xf32>
    %74 = arith.mulf %70, %73 : vector<4x32xf32>
    %75 = math.erf %74 : vector<4x32xf32>
    %cst_54 = arith.constant 1.000000e+00 : f32
    %76 = vector.broadcast %cst_54 : f32 to vector<4x32xf32>
    %77 = arith.addf %76, %75 : vector<4x32xf32>
    %78 = arith.mulf %72, %77 : vector<4x32xf32>
    %cst_55 = arith.constant dense<0.000000e+00> : vector<4x32xf32>
    %79 = tpu.matmul %78, %63, %cst_55 {dimension_numbers = #tpu.dot_dimension_numbers<[1], [0], [0], [1], [0, 0, 1, 1], [], []>} : vector<4x32xf32>, vector<32x32xf32>, vector<4x32xf32> -> vector<4x32xf32>
    %80 = vector.broadcast %64 : vector<1x32xf32> to vector<4x32xf32>
    %81 = arith.addf %79, %80 : vector<4x32xf32>
    %c0_56 = arith.constant 0 : index
    %c0_57 = arith.constant 0 : index
    %c0_58 = arith.constant 0 : index
    %82 = vector.load %arg10[%c0_56, %c0_57, %c0_58] : memref<2x4x32xf32, #tpu.memory_space<vmem>>, vector<1x4x32xf32>
    %83 = vector.shape_cast %82 : vector<1x4x32xf32> to vector<4x32xf32>
    %84 = vector.shape_cast %81 : vector<4x32xf32> to vector<1x4x32xf32>
    tpu.vector_store %arg10[%c0_56, %c0_57, %c0_58], %84 {strides = array<i32>} : memref<2x4x32xf32, #tpu.memory_space<vmem>>, vector<1x4x32xf32>,
    %c1_59 = arith.constant 1 : index
    %c0_60 = arith.constant 0 : index
    %c0_61 = arith.constant 0 : index
    %85 = vector.load %arg11[%c1_59, %c0_60, %c0_61] : memref<2x4x32xf32, #tpu.memory_space<vmem>>, vector<1x4x32xf32>
    %86 = vector.shape_cast %85 : vector<1x4x32xf32> to vector<4x32xf32>
    %87 = vector.broadcast %58 : vector<4x1xf32> to vector<4x32xf32>
    %88 = arith.mulf %86, %87 : vector<4x32xf32>
    %89 = vector.broadcast %62 : vector<4x1xf32> to vector<4x32xf32>
    %90 = arith.addf %88, %89 : vector<4x32xf32>
    %cst_62 = arith.constant 5.000000e-01 : f32
    %91 = vector.broadcast %cst_62 : f32 to vector<4x32xf32>
    %92 = arith.mulf %91, %90 : vector<4x32xf32>
    %cst_63 = arith.constant 0.707106769 : f32
    %93 = vector.broadcast %cst_63 : f32 to vector<4x32xf32>
    %94 = arith.mulf %90, %93 : vector<4x32xf32>
    %95 = math.erf %94 : vector<4x32xf32>
    %cst_64 = arith.constant 1.000000e+00 : f32
    %96 = vector.broadcast %cst_64 : f32 to vector<4x32xf32>
    %97 = arith.addf %96, %95 : vector<4x32xf32>
    %98 = arith.mulf %92, %97 : vector<4x32xf32>
    %cst_65 = arith.constant dense<0.000000e+00> : vector<4x32xf32>
    %99 = tpu.matmul %98, %63, %cst_65 {dimension_numbers = #tpu.dot_dimension_numbers<[1], [0], [0], [1], [0, 0, 1, 1], [], []>} : vector<4x32xf32>, vector<32x32xf32>, vector<4x32xf32> -> vector<4x32xf32>
    %100 = vector.broadcast %64 : vector<1x32xf32> to vector<4x32xf32>
    %101 = arith.addf %99, %100 : vector<4x32xf32>
    %c1_66 = arith.constant 1 : index
    %c0_67 = arith.constant 0 : index
    %c0_68 = arith.constant 0 : index
    %102 = vector.load %arg10[%c1_66, %c0_67, %c0_68] : memref<2x4x32xf32, #tpu.memory_space<vmem>>, vector<1x4x32xf32>
    %103 = vector.shape_cast %102 : vector<1x4x32xf32> to vector<4x32xf32>
    %104 = vector.shape_cast %101 : vector<4x32xf32> to vector<1x4x32xf32>
    tpu.vector_store %arg10[%c1_66, %c0_67, %c0_68], %104 {strides = array<i32>} : memref<2x4x32xf32, #tpu.memory_space<vmem>>, vector<1x4x32xf32>,
    return
  }
  func.func @transform_0(%arg0: i32) -> (i32, i32, i32) {
    %c0_i32 = arith.constant 0 : i32
    %c0_i32_0 = arith.constant 0 : i32
    %c0_i32_1 = arith.constant 0 : i32
    return %c0_i32, %arg0, %c0_i32_0 : i32, i32, i32
  }
  func.func @transform_1(%arg0: i32) -> (i32, i32, i32) {
    %c0_i32 = arith.constant 0 : i32
    %c0_i32_0 = arith.constant 0 : i32
    %c0_i32_1 = arith.constant 0 : i32
    return %c0_i32, %arg0, %c0_i32_0 : i32, i32, i32
  }
  func.func @transform_2(%arg0: i32) -> (i32, i32) {
    %c0_i32 = arith.constant 0 : i32
    %c0_i32_0 = arith.constant 0 : i32
    %c0_i32_1 = arith.constant 0 : i32
    return %c0_i32, %c0_i32_0 : i32, i32
  }
  func.func @transform_3(%arg0: i32) -> (i32, i32) {
    %c0_i32 = arith.constant 0 : i32
    %c0_i32_0 = arith.constant 0 : i32
    %c0_i32_1 = arith.constant 0 : i32
    return %c0_i32, %c0_i32_0 : i32, i32
  }
  func.func @transform_4(%arg0: i32) -> (i32, i32) {
    %c0_i32 = arith.constant 0 : i32
    %c0_i32_0 = arith.constant 0 : i32
    %c0_i32_1 = arith.constant 0 : i32
    return %c0_i32, %c0_i32_0 : i32, i32
  }
  func.func @transform_5(%arg0: i32) -> (i32, i32, i32) {
    %c0_i32 = arith.constant 0 : i32
    %c0_i32_0 = arith.constant 0 : i32
    %c0_i32_1 = arith.constant 0 : i32
    return %c0_i32, %arg0, %c0_i32_0 : i32, i32, i32
  }
  func.func @transform_6(%arg0: i32) -> (i32, i32, i32) {
    %c0_i32 = arith.constant 0 : i32
    %c0_i32_0 = arith.constant 0 : i32
    %c0_i32_1 = arith.constant 0 : i32
    return %c0_i32, %arg0, %c0_i32_0 : i32, i32, i32
  }
  func.func @transform_7(%arg0: i32) -> (i32, i32) {
    %c0_i32 = arith.constant 0 : i32
    %c0_i32_0 = arith.constant 0 : i32
    %c0_i32_1 = arith.constant 0 : i32
    return %c0_i32, %c0_i32_0 : i32, i32
  }
  func.func @transform_8(%arg0: i32) -> (i32, i32) {
    %c0_i32 = arith.constant 0 : i32
    %c0_i32_0 = arith.constant 0 : i32
    %c0_i32_1 = arith.constant 0 : i32
    return %c0_i32, %c0_i32_0 : i32, i32
  }
  func.func @transform_9(%arg0: i32) -> (i32, i32, i32) {
    %c0_i32 = arith.constant 0 : i32
    %c0_i32_0 = arith.constant 0 : i32
    %c0_i32_1 = arith.constant 0 : i32
    return %c0_i32, %arg0, %c0_i32_0 : i32, i32, i32
  }
}

</mosaic_0001>

<llo_original>
// kernel: tpu_custom_call.1
$region0: #{tpu_custom_call.1}
  #allocation0 [shape = 'u32[]', space=smem, size = 0x4, offset = 0x4, fixed_abs, tag = 'smem constant byte address 0x4 - core index']
  #allocation1 [shape = 'u32[144,128]{1,0:T(1,128)}', space=vmem, size = 0x12000, scoped, tag = 'internal scratch']
  #allocation2 [shape = 'f32[2,4,32]{2,1,0:T(4,128)}', space=vmem, size = 0x1000, scoped, tag = 'scratch operand']
  %s0 = inlined_call_operand.hbm [shape: f32[2,4,8], index: 0, kind: input, shape index: {}]
  %s1 = inlined_call_operand.hbm [shape: f32[2,4,32], index: 1, kind: input, shape index: {}]
  %s2 = inlined_call_operand.hbm [shape: f32[8,32], index: 2, kind: input, shape index: {}]
  %s3 = inlined_call_operand.hbm [shape: f32[32,32], index: 3, kind: input, shape index: {}]
  %s4 = inlined_call_operand.vmem [shape: f32[1,32], index: 4, kind: input, shape index: {}]
  %s5 = inlined_call_operand.vmem [shape: f32[1,4,1], index: 5, kind: input, shape index: {}]
  %s6 = inlined_call_operand.vmem [shape: f32[1,4,1], index: 6, kind: input, shape index: {}]
  %s7 = inlined_call_operand.vmem [shape: f32[32,32], index: 7, kind: input, shape index: {}]
  %s8 = inlined_call_operand.vmem [shape: f32[1,32], index: 8, kind: input, shape index: {}]
  %s9 = inlined_call_operand.hbm [shape: f32[2,4,32], index: 9, kind: output, shape index: {}]
  %s10 = sld [smem:[#allocation0]]
  $region62: #{tpu_custom_call.1} parent=0
    _
  %s12 = ssub.s32 1, %s10
  %s13 = scalar_select 0, %s12, %s10
  $region1: #{tpu_custom_call.1} parent=0
    #allocation3 [shape = 'u8[4096]{0}', space=vmem, size = 0x1000, scoped, tag = 'input window, operand 0, single buffered']
    #allocation4 [shape = 's32[1]{0}', space=sflag, size = 0x4, scoped, tag = 'scoped memory for tpu_custom_call.1']
    #allocation5 [shape = 's32[1]{0}', space=sflag, size = 0x4, scoped, tag = 'scoped memory for tpu_custom_call.1']
    #allocation6 [shape = 'u8[4096]{0}', space=vmem, size = 0x1000, scoped, tag = 'input window, operand 1, single buffered']
    #allocation7 [shape = 's32[1]{0}', space=sflag, size = 0x4, scoped, tag = 'scoped memory for tpu_custom_call.1']
    #allocation8 [shape = 'u8[4096]{0}', space=vmem, size = 0x1000, scoped, tag = 'input window, operand 2, single buffered']
    #allocation9 [shape = 'u8[16384]{0}', space=vmem, size = 0x4000, scoped, tag = 'input window, operand 3, single buffered']
    #allocation10 [shape = 's32[1]{0}', space=sflag, size = 0x4, scoped, tag = 'scoped memory for tpu_custom_call.1']
    #allocation11 [shape = 'u8[4096]{0}', space=vmem, size = 0x1000, scoped, tag = 'output window, operand 0, single buffered']
    %14 = vsyncpa [#allocation4], 0
    %15 = vsyncpa [#allocation7], 0
    %16 = vsyncpa [#allocation10], 0
    %17 = vsyncpa [#allocation5], 0
    // Predicated region
    $region2: #{tpu_custom_call.1} parent=1 // pred_check
      _
    $region3: #{tpu_custom_call.1} parent=1 // pred_check_branch
      %19 = sbr.rel (0) target = $region5
    $region4: #{tpu_custom_call.1} parent=1 // pred_region
      %s21 = ssub.s32 128, 128
      %22 = vsyncadd [#allocation4], %s21
      %s23 = sshll.u32 [#allocation3], 4
      %s24 = int_to_ptr.vmem [resolvable:$true] %s23
      %29 = dma.hbm_to_vmem [thread:$0]  %s0, 128, %s24, [#allocation4], 64, 64, 4
    $region5: #{tpu_custom_call.1} parent=1 // pred_fallthru
      _
    // Predicated region
    $region6: #{tpu_custom_call.1} parent=1 // pred_check
      _
    $region7: #{tpu_custom_call.1} parent=1 // pred_check_branch
      %31 = sbr.rel (0) target = $region9
    $region8: #{tpu_custom_call.1} parent=1 // pred_region
      %s33 = ssub.s32 128, 128
      %34 = vsyncadd [#allocation7], %s33
      %s35 = sshll.u32 [#allocation6], 4
      %s36 = int_to_ptr.vmem [resolvable:$true] %s35
      %41 = dma.hbm_to_vmem [thread:$0]  %s1, 128, %s36, [#allocation7], 64, 64, 4
    $region9: #{tpu_custom_call.1} parent=1 // pred_fallthru
      _
    // Predicated region
    $region10: #{tpu_custom_call.1} parent=1 // pred_check
      _
    $region11: #{tpu_custom_call.1} parent=1 // pred_check_branch
      %43 = sbr.rel (0) target = $region13
    $region12: #{tpu_custom_call.1} parent=1 // pred_region
      %s45 = ssub.s32 128, 128
      %46 = vsyncadd [#allocation7], %s45
      %s48 = sshll.u32 [#allocation8], 4
      %s49 = int_to_ptr.vmem [resolvable:$true] %s48
      %51 = dma.hbm_to_vmem [thread:$0]  %s2, 128, %s49, [#allocation7]
    $region13: #{tpu_custom_call.1} parent=1 // pred_fallthru
      _
    // Predicated region
    $region14: #{tpu_custom_call.1} parent=1 // pred_check
      _
    $region15: #{tpu_custom_call.1} parent=1 // pred_check_branch
      %53 = sbr.rel (0) target = $region17
    $region16: #{tpu_custom_call.1} parent=1 // pred_region
      %s55 = ssub.s32 512, 512
      %56 = vsyncadd [#allocation10], %s55
      %s57 = sshll.u32 [#allocation9], 4
      %s58 = int_to_ptr.vmem [resolvable:$true] %s57
      %63 = dma.hbm_to_vmem [thread:$0]  %s3, 512, %s58, [#allocation10], 128, 128, 8
    $region17: #{tpu_custom_call.1} parent=1 // pred_fallthru
      _
    // Predicated region
    $region18: #{tpu_custom_call.1} parent=1 // pred_check
      _
    $region19: #{tpu_custom_call.1} parent=1 // pred_check_branch
      %65 = sbr.rel (0) target = $region21
    $region20: #{tpu_custom_call.1} parent=1 // pred_region
      _
    $region21: #{tpu_custom_call.1} parent=1 // pred_fallthru
      _
    // Predicated region
    $region22: #{tpu_custom_call.1} parent=1 // pred_check
      _
    $region23: #{tpu_custom_call.1} parent=1 // pred_check_branch
      %67 = sbr.rel (0) target = $region25
    $region24: #{tpu_custom_call.1} parent=1 // pred_region
      _
    $region25: #{tpu_custom_call.1} parent=1 // pred_fallthru
      _
    // Predicated region
    $region26: #{tpu_custom_call.1} parent=1 // pred_check
      _
    $region27: #{tpu_custom_call.1} parent=1 // pred_check_branch
      %69 = sbr.rel (0) target = $region29
    $region28: #{tpu_custom_call.1} parent=1 // pred_region
      _
    $region29: #{tpu_custom_call.1} parent=1 // pred_fallthru
      _
    // Predicated region
    $region30: #{tpu_custom_call.1} parent=1 // pred_check
      _
    $region31: #{tpu_custom_call.1} parent=1 // pred_check_branch
      %71 = sbr.rel (0) target = $region33
    $region32: #{tpu_custom_call.1} parent=1 // pred_region
      _
    $region33: #{tpu_custom_call.1} parent=1 // pred_fallthru
      _
    // Predicated region
    $region34: #{tpu_custom_call.1} parent=1 // pred_check
      _
    $region35: #{tpu_custom_call.1} parent=1 // pred_check_branch
      %73 = sbr.rel (0) target = $region37
    $region36: #{tpu_custom_call.1} parent=1 // pred_region
      _
    $region37: #{tpu_custom_call.1} parent=1 // pred_fallthru
      _
    // Predicated region
    $region38: #{tpu_custom_call.1} parent=1 // pred_check
      _
    $region39: #{tpu_custom_call.1} parent=1 // pred_check_branch
      %75 = sbr.rel (0) target = $region41
    $region40: #{tpu_custom_call.1} parent=1 // pred_region
      %76 = dma.done [#allocation4], 128
    $region41: #{tpu_custom_call.1} parent=1 // pred_fallthru
      _
    // Predicated region
    $region42: #{tpu_custom_call.1} parent=1 // pred_check
      _
    $region43: #{tpu_custom_call.1} parent=1 // pred_check_branch
      %78 = sbr.rel (0) target = $region45
    $region44: #{tpu_custom_call.1} parent=1 // pred_region
      %79 = dma.done [#allocation7], 128
    $region45: #{tpu_custom_call.1} parent=1 // pred_fallthru
      _
    // Predicated region
    $region46: #{tpu_custom_call.1} parent=1 // pred_check
      _
    $region47: #{tpu_custom_call.1} parent=1 // pred_check_branch
      %81 = sbr.rel (0) target = $region49
    $region48: #{tpu_custom_call.1} parent=1 // pred_region
      %82 = dma.done [#allocation7], 128
    $region49: #{tpu_custom_call.1} parent=1 // pred_fallthru
      _
    // Predicated region
    $region50: #{tpu_custom_call.1} parent=1 // pred_check
      _
    $region51: #{tpu_custom_call.1} parent=1 // pred_check_branch
      %84 = sbr.rel (0) target = $region53
    $region52: #{tpu_custom_call.1} parent=1 // pred_region
      %85 = dma.done [#allocation10], 512
    $region53: #{tpu_custom_call.1} parent=1 // pred_fallthru
      _
    %v86 = vld [vmem:[%s4] sm:$0x1]
    %v87 = vld [vmem:[#allocation3] sm:$0xf]
    %v88 = vld [vmem:[#allocation8] sm:$0xff]
    %v89 = vld [vmem:[#allocation6] sm:$0xf]
    %v90 = vld [vmem:[#allocation9] sm:$0xff]
    %v91 = vld [vmem:[#allocation9 + $0x8] sm:$0xff]
    %v92 = vld [vmem:[#allocation9 + $0x10] sm:$0xff]
    %v93 = vld [vmem:[#allocation9 + $0x18] sm:$0xff]
    %vm94 = vcmask 261120
    %v96 = vsel %vm94, %v89, 0
    %98 = vmatprep.subr.mxu0 0.0
    %99 = vmatpush1.msra.mxu0 %v90
    %100 = vmatprep.subr.mxu0 0.0
    %101 = vmatpush1.msra.mxu0 %v91
    %102 = vmatprep.subr.mxu0 0.0
    %103 = vmatpush1.msra.mxu0 %v92
    %104 = vmatprep.subr.mxu0 0.0
    %105 = vmatpush1.msra.mxu0 %v93
    %106 = vmatprep.subr.mxu0 0.0
    %107 = vmatpush1.msra.mxu0 0.0
    %108 = vmatprep.subr.mxu0 0.0
    %109 = vmatpush1.msra.mxu0 0.0
    %110 = vmatprep.subr.mxu0 0.0
    %111 = vmatpush1.msra.mxu0 0.0
    %112 = vmatprep.subr.mxu0 0.0
    %113 = vmatpush1.msra.mxu0 0.0
    %114 = vmatprep.subr.mxu0 0.0
    %115 = vmatpush1.msra.mxu0 0.0
    %116 = vmatprep.subr.mxu0 0.0
    %117 = vmatpush1.msra.mxu0 0.0
    %118 = vmatprep.subr.mxu0 0.0
    %119 = vmatpush1.msra.mxu0 0.0
    %120 = vmatprep.subr.mxu0 0.0
    %121 = vmatpush1.msra.mxu0 0.0
    %122 = vmatprep.subr.mxu0 0.0
    %123 = vmatpush1.msra.mxu0 0.0
    %124 = vmatprep.subr.mxu0 0.0
    %125 = vmatpush1.msra.mxu0 0.0
    %126 = vmatprep.subr.mxu0 0.0
    %127 = vmatpush1.msra.mxu0 0.0
    %128 = vmatprep.subr.mxu0 0.0
    %129 = vmatpush1.msra.mxu0 0.0
    %130 = vmatprep.subr.mxu0 0.0
    %131 = vmatpush1.msra.mxu0 0.0
    %132 = vmatprep.subr.mxu0 0.0
    %133 = vmatpush1.msra.mxu0 0.0
    %134 = vmatprep.subr.mxu0 0.0
    %135 = vmatpush1.msra.mxu0 0.0
    %136 = vmatprep.subr.mxu0 0.0
    %137 = vmatpush1.msra.mxu0 0.0
    %138 = vmatprep.subr.mxu0 0.0
    %139 = vmatpush1.msra.mxu0 0.0
    %140 = vmatprep.subr.mxu0 0.0
    %141 = vmatpush1.msra.mxu0 0.0
    %142 = vmatprep.subr.mxu0 0.0
    %143 = vmatpush1.msra.mxu0 0.0
    %144 = vmatprep.subr.mxu0 0.0
    %145 = vmatpush1.msra.mxu0 0.0
    %146 = vmatprep.subr.mxu0 0.0
    %147 = vmatpush1.msra.mxu0 0.0
    %148 = vmatprep.subr.mxu0 0.0
    %149 = vmatpush1.msra.mxu0 0.0
    %150 = vmatprep.subr.mxu0 0.0
    %151 = vmatpush1.msra.mxu0 0.0
    %152 = vmatprep.subr.mxu0 0.0
    %153 = vmatpush1.msra.mxu0 0.0
    %154 = vmatprep.subr.mxu0 0.0
    %155 = vmatpush1.msra.mxu0 0.0
    %156 = vmatprep.subr.mxu0 0.0
    %157 = vmatpush1.msra.mxu0 0.0
    %158 = vmatprep.subr.mxu0 0.0
    %159 = vmatpush1.msra.mxu0 0.0
    %160 = vmatprep.subr.mxu0 0.0
    %161 = vmatpush1.msra.mxu0 0.0
    %162 = vmatprep.mubr.f32.mxu0 0.0
    %163 = vmatmul.mubr.f32.gmra.mrb[0].mxu0 %v96
    %v164 = vpop.f32.mrb[0].mxu0
    %v165 = vadd.f32 0.0, %v164
    %v166 = vpop.f32.mrb[0].mxu0
    %167 = vdwg.mxu0
    %vm168 = vcmask 64512
    %v170 = vsel %vm168, %v87, 0
    %172 = vmatprep.subr.mxu0 0.0
    %173 = vmatpush1.msra.mxu0 %v88
    %174 = vmatprep.subr.mxu0 0.0
    %175 = vmatpush1.msra.mxu0 0.0
    %176 = vmatprep.subr.mxu0 0.0
    %177 = vmatpush1.msra.mxu0 0.0
    %178 = vmatprep.subr.mxu0 0.0
    %179 = vmatpush1.msra.mxu0 0.0
    %180 = vmatprep.subr.mxu0 0.0
    %181 = vmatpush1.msra.mxu0 0.0
    %182 = vmatprep.subr.mxu0 0.0
    %183 = vmatpush1.msra.mxu0 0.0
    %184 = vmatprep.subr.mxu0 0.0
    %185 = vmatpush1.msra.mxu0 0.0
    %186 = vmatprep.subr.mxu0 0.0
    %187 = vmatpush1.msra.mxu0 0.0
    %188 = vmatprep.subr.mxu0 0.0
    %189 = vmatpush1.msra.mxu0 0.0
    %190 = vmatprep.subr.mxu0 0.0
    %191 = vmatpush1.msra.mxu0 0.0
    %192 = vmatprep.subr.mxu0 0.0
    %193 = vmatpush1.msra.mxu0 0.0
    %194 = vmatprep.subr.mxu0 0.0
    %195 = vmatpush1.msra.mxu0 0.0
    %196 = vmatprep.subr.mxu0 0.0
    %197 = vmatpush1.msra.mxu0 0.0
    %198 = vmatprep.subr.mxu0 0.0
    %199 = vmatpush1.msra.mxu0 0.0
    %200 = vmatprep.subr.mxu0 0.0
    %201 = vmatpush1.msra.mxu0 0.0
    %202 = vmatprep.subr.mxu0 0.0
    %203 = vmatpush1.msra.mxu0 0.0
    %204 = vmatprep.subr.mxu0 0.0
    %205 = vmatpush1.msra.mxu0 0.0
    %206 = vmatprep.subr.mxu0 0.0
    %207 = vmatpush1.msra.mxu0 0.0
    %208 = vmatprep.subr.mxu0 0.0
    %209 = vmatpush1.msra.mxu0 0.0
    %210 = vmatprep.subr.mxu0 0.0
    %211 = vmatpush1.msra.mxu0 0.0
    %212 = vmatprep.subr.mxu0 0.0
    %213 = vmatpush1.msra.mxu0 0.0
    %214 = vmatprep.subr.mxu0 0.0
    %215 = vmatpush1.msra.mxu0 0.0
    %216 = vmatprep.subr.mxu0 0.0
    %217 = vmatpush1.msra.mxu0 0.0
    %218 = vmatprep.subr.mxu0 0.0
    %219 = vmatpush1.msra.mxu0 0.0
    %220 = vmatprep.subr.mxu0 0.0
    %221 = vmatpush1.msra.mxu0 0.0
    %222 = vmatprep.subr.mxu0 0.0
    %223 = vmatpush1.msra.mxu0 0.0
    %224 = vmatprep.subr.mxu0 0.0
    %225 = vmatpush1.msra.mxu0 0.0
    %226 = vmatprep.subr.mxu0 0.0
    %227 = vmatpush1.msra.mxu0 0.0
    %228 = vmatprep.subr.mxu0 0.0
    %229 = vmatpush1.msra.mxu0 0.0
    %230 = vmatprep.subr.mxu0 0.0
    %231 = vmatpush1.msra.mxu0 0.0
    %232 = vmatprep.subr.mxu0 0.0
    %233 = vmatpush1.msra.mxu0 0.0
    %234 = vmatprep.subr.mxu0 0.0
    %235 = vmatpush1.msra.mxu0 0.0
    %236 = vmatprep.mubr.f32.mxu0 0.0
    %237 = vmatmul.mubr.f32.gmra.mrb[0].mxu0 %v170
    %v238 = vpop.f32.mrb[0].mxu0
    %v239 = vadd.f32 %v165, %v238
    %v240 = vpop.f32.mrb[0].mxu0
    %241 = vdwg.mxu0
    %v243 = vlaneseq
    %v244 = vshrl.u32 %v243, 7
    %v245 = vsub.s32 0, %v244
    %v246 = vrot.slane %v86, %v245
    %v248 = vadd.f32 %v239, %v246
    %vm249 = vcmask 257024
    %250 = vst.msk [vmem:[#allocation2] sm:$0xf] %vm249, %v248
    %v251 = vsel %vm249, %v248, 0.0
    %252 = vadd.xlane.f32.xlu0 %v251
    %v253 = vpop.xlane.xlu0 %252
    %v254 = vadd.f32 %v253, 0.0
    %v255 = vmul.f32 %v248, %v248
    %v256 = vsel %vm249, %v255, 0.0
    %257 = vadd.xlane.f32.xlu0 %v256
    %v258 = vpop.xlane.xlu0 %257
    %v259 = vadd.f32 %v258, 0.0
    %s260 = scalar_lea.vmem [#allocation3], 4
    %v261 = vld [vmem:[%s260] sm:$0xf]
    %v262 = vld [vmem:[#allocation8] sm:$0xff]
    %s263 = scalar_lea.vmem [#allocation6], 4
    %v264 = vld [vmem:[%s263] sm:$0xf]
    %v265 = vld [vmem:[#allocation9] sm:$0xff]
    %v266 = vld [vmem:[#allocation9 + $0x8] sm:$0xff]
    %v267 = vld [vmem:[#allocation9 + $0x10] sm:$0xff]
    %v268 = vld [vmem:[#allocation9 + $0x18] sm:$0xff]
    %v270 = vsel %vm94, %v264, 0
    %272 = vmatprep.subr.mxu0 0.0
    %273 = vmatpush1.msra.mxu0 %v265
    %274 = vmatprep.subr.mxu0 0.0
    %275 = vmatpush1.msra.mxu0 %v266
    %276 = vmatprep.subr.mxu0 0.0
    %277 = vmatpush1.msra.mxu0 %v267
    %278 = vmatprep.subr.mxu0 0.0
    %279 = vmatpush1.msra.mxu0 %v268
    %280 = vmatprep.subr.mxu0 0.0
    %281 = vmatpush1.msra.mxu0 0.0
    %282 = vmatprep.subr.mxu0 0.0
    %283 = vmatpush1.msra.mxu0 0.0
    %284 = vmatprep.subr.mxu0 0.0
    %285 = vmatpush1.msra.mxu0 0.0
    %286 = vmatprep.subr.mxu0 0.0
    %287 = vmatpush1.msra.mxu0 0.0
    %288 = vmatprep.subr.mxu0 0.0
    %289 = vmatpush1.msra.mxu0 0.0
    %290 = vmatprep.subr.mxu0 0.0
    %291 = vmatpush1.msra.mxu0 0.0
    %292 = vmatprep.subr.mxu0 0.0
    %293 = vmatpush1.msra.mxu0 0.0
    %294 = vmatprep.subr.mxu0 0.0
    %295 = vmatpush1.msra.mxu0 0.0
    %296 = vmatprep.subr.mxu0 0.0
    %297 = vmatpush1.msra.mxu0 0.0
    %298 = vmatprep.subr.mxu0 0.0
    %299 = vmatpush1.msra.mxu0 0.0
    %300 = vmatprep.subr.mxu0 0.0
    %301 = vmatpush1.msra.mxu0 0.0
    %302 = vmatprep.subr.mxu0 0.0
    %303 = vmatpush1.msra.mxu0 0.0
    %304 = vmatprep.subr.mxu0 0.0
    %305 = vmatpush1.msra.mxu0 0.0
    %306 = vmatprep.subr.mxu0 0.0
    %307 = vmatpush1.msra.mxu0 0.0
    %308 = vmatprep.subr.mxu0 0.0
    %309 = vmatpush1.msra.mxu0 0.0
    %310 = vmatprep.subr.mxu0 0.0
    %311 = vmatpush1.msra.mxu0 0.0
    %312 = vmatprep.subr.mxu0 0.0
    %313 = vmatpush1.msra.mxu0 0.0
    %314 = vmatprep.subr.mxu0 0.0
    %315 = vmatpush1.msra.mxu0 0.0
    %316 = vmatprep.subr.mxu0 0.0
    %317 = vmatpush1.msra.mxu0 0.0
    %318 = vmatprep.subr.mxu0 0.0
    %319 = vmatpush1.msra.mxu0 0.0
    %320 = vmatprep.subr.mxu0 0.0
    %321 = vmatpush1.msra.mxu0 0.0
    %322 = vmatprep.subr.mxu0 0.0
    %323 = vmatpush1.msra.mxu0 0.0
    %324 = vmatprep.subr.mxu0 0.0
    %325 = vmatpush1.msra.mxu0 0.0
    %326 = vmatprep.subr.mxu0 0.0
    %327 = vmatpush1.msra.mxu0 0.0
    %328 = vmatprep.subr.mxu0 0.0
    %329 = vmatpush1.msra.mxu0 0.0
    %330 = vmatprep.subr.mxu0 0.0
    %331 = vmatpush1.msra.mxu0 0.0
    %332 = vmatprep.subr.mxu0 0.0
    %333 = vmatpush1.msra.mxu0 0.0
    %334 = vmatprep.subr.mxu0 0.0
    %335 = vmatpush1.msra.mxu0 0.0
    %336 = vmatprep.mubr.f32.mxu0 0.0
    %337 = vmatmul.mubr.f32.gmra.mrb[0].mxu0 %v270
    %v338 = vpop.f32.mrb[0].mxu0
    %v339 = vadd.f32 0.0, %v338
    %v340 = vpop.f32.mrb[0].mxu0
    %341 = vdwg.mxu0
    %v343 = vsel %vm168, %v261, 0
    %345 = vmatprep.subr.mxu0 0.0
    %346 = vmatpush1.msra.mxu0 %v262
    %347 = vmatprep.subr.mxu0 0.0
    %348 = vmatpush1.msra.mxu0 0.0
    %349 = vmatprep.subr.mxu0 0.0
    %350 = vmatpush1.msra.mxu0 0.0
    %351 = vmatprep.subr.mxu0 0.0
    %352 = vmatpush1.msra.mxu0 0.0
    %353 = vmatprep.subr.mxu0 0.0
    %354 = vmatpush1.msra.mxu0 0.0
    %355 = vmatprep.subr.mxu0 0.0
    %356 = vmatpush1.msra.mxu0 0.0
    %357 = vmatprep.subr.mxu0 0.0
    %358 = vmatpush1.msra.mxu0 0.0
    %359 = vmatprep.subr.mxu0 0.0
    %360 = vmatpush1.msra.mxu0 0.0
    %361 = vmatprep.subr.mxu0 0.0
    %362 = vmatpush1.msra.mxu0 0.0
    %363 = vmatprep.subr.mxu0 0.0
    %364 = vmatpush1.msra.mxu0 0.0
    %365 = vmatprep.subr.mxu0 0.0
    %366 = vmatpush1.msra.mxu0 0.0
    %367 = vmatprep.subr.mxu0 0.0
    %368 = vmatpush1.msra.mxu0 0.0
    %369 = vmatprep.subr.mxu0 0.0
    %370 = vmatpush1.msra.mxu0 0.0
    %371 = vmatprep.subr.mxu0 0.0
    %372 = vmatpush1.msra.mxu0 0.0
    %373 = vmatprep.subr.mxu0 0.0
    %374 = vmatpush1.msra.mxu0 0.0
    %375 = vmatprep.subr.mxu0 0.0
    %376 = vmatpush1.msra.mxu0 0.0
    %377 = vmatprep.subr.mxu0 0.0
    %378 = vmatpush1.msra.mxu0 0.0
    %379 = vmatprep.subr.mxu0 0.0
    %380 = vmatpush1.msra.mxu0 0.0
    %381 = vmatprep.subr.mxu0 0.0
    %382 = vmatpush1.msra.mxu0 0.0
    %383 = vmatprep.subr.mxu0 0.0
    %384 = vmatpush1.msra.mxu0 0.0
    %385 = vmatprep.subr.mxu0 0.0
    %386 = vmatpush1.msra.mxu0 0.0
    %387 = vmatprep.subr.mxu0 0.0
    %388 = vmatpush1.msra.mxu0 0.0
    %389 = vmatprep.subr.mxu0 0.0
    %390 = vmatpush1.msra.mxu0 0.0
    %391 = vmatprep.subr.mxu0 0.0
    %392 = vmatpush1.msra.mxu0 0.0
    %393 = vmatprep.subr.mxu0 0.0
    %394 = vmatpush1.msra.mxu0 0.0
    %395 = vmatprep.subr.mxu0 0.0
    %396 = vmatpush1.msra.mxu0 0.0
    %397 = vmatprep.subr.mxu0 0.0
    %398 = vmatpush1.msra.mxu0 0.0
    %399 = vmatprep.subr.mxu0 0.0
    %400 = vmatpush1.msra.mxu0 0.0
    %401 = vmatprep.subr.mxu0 0.0
    %402 = vmatpush1.msra.mxu0 0.0
    %403 = vmatprep.subr.mxu0 0.0
    %404 = vmatpush1.msra.mxu0 0.0
    %405 = vmatprep.subr.mxu0 0.0
    %406 = vmatpush1.msra.mxu0 0.0
    %407 = vmatprep.subr.mxu0 0.0
    %408 = vmatpush1.msra.mxu0 0.0
    %409 = vmatprep.mubr.f32.mxu0 0.0
    %410 = vmatmul.mubr.f32.gmra.mrb[0].mxu0 %v343
    %v411 = vpop.f32.mrb[0].mxu0
    %v412 = vadd.f32 %v339, %v411
    %v413 = vpop.f32.mrb[0].mxu0
    %414 = vdwg.mxu0
    %v415 = vadd.f32 %v412, %v246
    %s416 = scalar_lea.vmem [#allocation2], 4
    %417 = vst.msk [vmem:[%s416] sm:$0xf] %vm249, %v415
    %v418 = vsel %vm249, %v415, 0.0
    %419 = vadd.xlane.f32.xlu0 %v418
    %v420 = vpop.xlane.xlu0 %419
    %v421 = vadd.f32 %v254, %v420
    %v422 = vmul.f32 %v415, %v415
    %v423 = vsel %vm249, %v422, 0.0
    %424 = vadd.xlane.f32.xlu0 %v423
    %v425 = vpop.xlane.xlu0 %424
    %v426 = vadd.f32 %v259, %v425
    %v427 = vmul.f32 %v421, 0.015625
    %v428 = vmul.f32 %v426, 0.015625
    %v429 = vmul.f32 %v427, %v427
    %v430 = vsub.f32 %v428, %v429
    %v431 = vmax.f32 %v430, 0.0
    %v432 = vld [vmem:[%s5] sm:$0xf]
    %v433 = vadd.f32 %v431, 1e-05
    %v434 = vrsqrt.pop %v433
    %v435 = vmul.f32 %v432, %v434
    %v436 = vld [vmem:[%s6] sm:$0xf]
    %v437 = vmul.f32 %v427, %v435
    %v438 = vsub.f32 %v436, %v437
    %v439 = vld [vmem:[%s7] sm:$0xff]
    %v440 = vld [vmem:[%s7 + $0x8] sm:$0xff]
    %v441 = vld [vmem:[%s7 + $0x10] sm:$0xff]
    %v442 = vld [vmem:[%s7 + $0x18] sm:$0xff]
    %v443 = vld [vmem:[%s8] sm:$0x1]
    %v444 = vld [vmem:[#allocation2] sm:$0xf]
    %446 = vset.pattern.permute.xlu0 0
    %447 = vperm.xlu0 %446, %v435
    %v448 = vpop.permute.xlu0 %447
    %v450 = vmul.f32 %v444, %v448
    %452 = vset.pattern.permute.xlu0 0
    %453 = vperm.xlu0 %452, %v438
    %v454 = vpop.permute.xlu0 %453
    %v456 = vadd.f32 %v450, %v454
    %v457 = vmul.f32 %v456, 0.5
    %v458 = vmul.f32 %v456, 0.70710677
    %v459 = verf.f32.pop %v458
    %v460 = vadd.f32 %v459, 1.0
    %v461 = vmul.f32 %v457, %v460
    %v463 = vlaneseq
    %v464 = vshrl.u32 %v463, 7
    %v465 = vsub.s32 0, %v464
    %v466 = vrot.slane %v443, %v465
    %v469 = vsel %vm94, %v461, 0
    %471 = vmatprep.subr.mxu0 0.0
    %472 = vmatpush1.msra.mxu0 %v439
    %473 = vmatprep.subr.mxu0 0.0
    %474 = vmatpush1.msra.mxu0 %v440
    %475 = vmatprep.subr.mxu0 0.0
    %476 = vmatpush1.msra.mxu0 %v441
    %477 = vmatprep.subr.mxu0 0.0
    %478 = vmatpush1.msra.mxu0 %v442
    %479 = vmatprep.subr.mxu0 0.0
    %480 = vmatpush1.msra.mxu0 0.0
    %481 = vmatprep.subr.mxu0 0.0
    %482 = vmatpush1.msra.mxu0 0.0
    %483 = vmatprep.subr.mxu0 0.0
    %484 = vmatpush1.msra.mxu0 0.0
    %485 = vmatprep.subr.mxu0 0.0
    %486 = vmatpush1.msra.mxu0 0.0
    %487 = vmatprep.subr.mxu0 0.0
    %488 = vmatpush1.msra.mxu0 0.0
    %489 = vmatprep.subr.mxu0 0.0
    %490 = vmatpush1.msra.mxu0 0.0
    %491 = vmatprep.subr.mxu0 0.0
    %492 = vmatpush1.msra.mxu0 0.0
    %493 = vmatprep.subr.mxu0 0.0
    %494 = vmatpush1.msra.mxu0 0.0
    %495 = vmatprep.subr.mxu0 0.0
    %496 = vmatpush1.msra.mxu0 0.0
    %497 = vmatprep.subr.mxu0 0.0
    %498 = vmatpush1.msra.mxu0 0.0
    %499 = vmatprep.subr.mxu0 0.0
    %500 = vmatpush1.msra.mxu0 0.0
    %501 = vmatprep.subr.mxu0 0.0
    %502 = vmatpush1.msra.mxu0 0.0
    %503 = vmatprep.subr.mxu0 0.0
    %504 = vmatpush1.msra.mxu0 0.0
    %505 = vmatprep.subr.mxu0 0.0
    %506 = vmatpush1.msra.mxu0 0.0
    %507 = vmatprep.subr.mxu0 0.0
    %508 = vmatpush1.msra.mxu0 0.0
    %509 = vmatprep.subr.mxu0 0.0
    %510 = vmatpush1.msra.mxu0 0.0
    %511 = vmatprep.subr.mxu0 0.0
    %512 = vmatpush1.msra.mxu0 0.0
    %513 = vmatprep.subr.mxu0 0.0
    %514 = vmatpush1.msra.mxu0 0.0
    %515 = vmatprep.subr.mxu0 0.0
    %516 = vmatpush1.msra.mxu0 0.0
    %517 = vmatprep.subr.mxu0 0.0
    %518 = vmatpush1.msra.mxu0 0.0
    %519 = vmatprep.subr.mxu0 0.0
    %520 = vmatpush1.msra.mxu0 0.0
    %521 = vmatprep.subr.mxu0 0.0
    %522 = vmatpush1.msra.mxu0 0.0
    %523 = vmatprep.subr.mxu0 0.0
    %524 = vmatpush1.msra.mxu0 0.0
    %525 = vmatprep.subr.mxu0 0.0
    %526 = vmatpush1.msra.mxu0 0.0
    %527 = vmatprep.subr.mxu0 0.0
    %528 = vmatpush1.msra.mxu0 0.0
    %529 = vmatprep.subr.mxu0 0.0
    %530 = vmatpush1.msra.mxu0 0.0
    %531 = vmatprep.subr.mxu0 0.0
    %532 = vmatpush1.msra.mxu0 0.0
    %533 = vmatprep.subr.mxu0 0.0
    %534 = vmatpush1.msra.mxu0 0.0
    %535 = vmatprep.mubr.f32.mxu0 0.0
    %536 = vmatmul.mubr.f32.gmra.mrb[0].mxu0 %v469
    %v537 = vpop.f32.mrb[0].mxu0
    %v538 = vadd.f32 %v466, %v537
    %v539 = vpop.f32.mrb[0].mxu0
    %540 = vdwg.mxu0
    %541 = vst.msk [vmem:[#allocation11] sm:$0xf] %vm249, %v538
    %v542 = vld [vmem:[%s416] sm:$0xf]
    %v543 = vmul.f32 %v542, %v448
    %v544 = vadd.f32 %v543, %v454
    %v545 = vmul.f32 %v544, 0.5
    %v546 = vmul.f32 %v544, 0.70710677
    %v547 = verf.f32.pop %v546
    %v548 = vadd.f32 %v547, 1.0
    %v549 = vmul.f32 %v545, %v548
    %v551 = vsel %vm94, %v549, 0
    %553 = vmatprep.subr.mxu0 0.0
    %554 = vmatpush1.msra.mxu0 %v439
    %555 = vmatprep.subr.mxu0 0.0
    %556 = vmatpush1.msra.mxu0 %v440
    %557 = vmatprep.subr.mxu0 0.0
    %558 = vmatpush1.msra.mxu0 %v441
    %559 = vmatprep.subr.mxu0 0.0
    %560 = vmatpush1.msra.mxu0 %v442
    %561 = vmatprep.subr.mxu0 0.0
    %562 = vmatpush1.msra.mxu0 0.0
    %563 = vmatprep.subr.mxu0 0.0
    %564 = vmatpush1.msra.mxu0 0.0
    %565 = vmatprep.subr.mxu0 0.0
    %566 = vmatpush1.msra.mxu0 0.0
    %567 = vmatprep.subr.mxu0 0.0
    %568 = vmatpush1.msra.mxu0 0.0
    %569 = vmatprep.subr.mxu0 0.0
    %570 = vmatpush1.msra.mxu0 0.0
    %571 = vmatprep.subr.mxu0 0.0
    %572 = vmatpush1.msra.mxu0 0.0
    %573 = vmatprep.subr.mxu0 0.0
    %574 = vmatpush1.msra.mxu0 0.0
    %575 = vmatprep.subr.mxu0 0.0
    %576 = vmatpush1.msra.mxu0 0.0
    %577 = vmatprep.subr.mxu0 0.0
    %578 = vmatpush1.msra.mxu0 0.0
    %579 = vmatprep.subr.mxu0 0.0
    %580 = vmatpush1.msra.mxu0 0.0
    %581 = vmatprep.subr.mxu0 0.0
    %582 = vmatpush1.msra.mxu0 0.0
    %583 = vmatprep.subr.mxu0 0.0
    %584 = vmatpush1.msra.mxu0 0.0
    %585 = vmatprep.subr.mxu0 0.0
    %586 = vmatpush1.msra.mxu0 0.0
    %587 = vmatprep.subr.mxu0 0.0
    %588 = vmatpush1.msra.mxu0 0.0
    %589 = vmatprep.subr.mxu0 0.0
    %590 = vmatpush1.msra.mxu0 0.0
    %591 = vmatprep.subr.mxu0 0.0
    %592 = vmatpush1.msra.mxu0 0.0
    %593 = vmatprep.subr.mxu0 0.0
    %594 = vmatpush1.msra.mxu0 0.0
    %595 = vmatprep.subr.mxu0 0.0
    %596 = vmatpush1.msra.mxu0 0.0
    %597 = vmatprep.subr.mxu0 0.0
    %598 = vmatpush1.msra.mxu0 0.0
    %599 = vmatprep.subr.mxu0 0.0
    %600 = vmatpush1.msra.mxu0 0.0
    %601 = vmatprep.subr.mxu0 0.0
    %602 = vmatpush1.msra.mxu0 0.0
    %603 = vmatprep.subr.mxu0 0.0
    %604 = vmatpush1.msra.mxu0 0.0
    %605 = vmatprep.subr.mxu0 0.0
    %606 = vmatpush1.msra.mxu0 0.0
    %607 = vmatprep.subr.mxu0 0.0
    %608 = vmatpush1.msra.mxu0 0.0
    %609 = vmatprep.subr.mxu0 0.0
    %610 = vmatpush1.msra.mxu0 0.0
    %611 = vmatprep.subr.mxu0 0.0
    %612 = vmatpush1.msra.mxu0 0.0
    %613 = vmatprep.subr.mxu0 0.0
    %614 = vmatpush1.msra.mxu0 0.0
    %615 = vmatprep.subr.mxu0 0.0
    %616 = vmatpush1.msra.mxu0 0.0
    %617 = vmatprep.mubr.f32.mxu0 0.0
    %618 = vmatmul.mubr.f32.gmra.mrb[0].mxu0 %v551
    %v619 = vpop.f32.mrb[0].mxu0
    %v620 = vadd.f32 %v466, %v619
    %v621 = vpop.f32.mrb[0].mxu0
    %622 = vdwg.mxu0
    %s623 = scalar_lea.vmem [#allocation11], 4
    %624 = vst.msk [vmem:[%s623] sm:$0xf] %vm249, %v620
    // Predicated region
    $region54: #{tpu_custom_call.1} parent=1 // pred_check
      _
    $region55: #{tpu_custom_call.1} parent=1 // pred_check_branch
      %626 = sbr.rel (0) target = $region57
    $region56: #{tpu_custom_call.1} parent=1 // pred_region
      %s628 = ssub.s32 128, 128
      %629 = vsyncadd [#allocation5], %s628
      %s630 = sshll.u32 [#allocation11], 4
      %s631 = int_to_ptr.vmem [resolvable:$true] %s630
      %636 = dma.vmem_to_hbm [thread:$0]  %s631, 128, %s9, [#allocation5], 64, 64, 4
    $region57: #{tpu_custom_call.1} parent=1 // pred_fallthru
      _
    // Predicated region
    $region58: #{tpu_custom_call.1} parent=1 // pred_check
      _
    $region59: #{tpu_custom_call.1} parent=1 // pred_check_branch
      %638 = sbr.rel (0) target = $region61
    $region60: #{tpu_custom_call.1} parent=1 // pred_region
      %639 = dma.done [#allocation5], 128
    $region61: #{tpu_custom_call.1} parent=1 // pred_fallthru
      _
    %640 = vsyncpa [#allocation4], 1
    %641 = vsyncpa [#allocation7], 1
    %642 = vsyncpa [#allocation10], 1
    %643 = vsyncpa [#allocation5], 1

</llo_original>
